<compile_context>
chip_gen: v6e
topology: v6e:2x2x1
jax: 0.10.0
libtpu: 0.0.40
codegen_flags: <defaults>
</compile_context>

<pallas_src>
import functools

import jax
import jax.numpy as jnp
from jax.experimental import pallas as pl
from jax.experimental.pallas import tpu as pltpu


def _round_up(x: int, m: int) -> int:
    return ((x + m - 1) // m) * m


def _padded_tile_bytes(rows: int, cols: int, dtype) -> int:
    """VMEM footprint of one (rows, cols) block: last dim pads to 128 lanes,
    second-minor pads to the dtype's sublane tile (8 f32 / 16 bf16 / 32 i8)."""
    itemsize = jnp.dtype(dtype).itemsize
    sublane = 8 * max(1, 4 // itemsize)
    return (_round_up(max(rows, 1), sublane)
            * _round_up(max(cols, 1), 128) * itemsize)


def _vmem_capacity_bytes() -> int:
    """Physical VMEM per TensorCore (generation-aware), with a safe fallback."""
    try:
        cap = getattr(pltpu.get_tpu_info(), "vmem_capacity_bytes", None)
        if cap:
            return int(cap)
    except Exception:
        pass
    return 64 << 20            # conservative fallback (v7x per-TC VMEM)


def _encoder_kernel(v_ref, a_ref, wv_ref, wa_ref, b_ref, out_ref):
    # One batch tile:  out = [v | a] @ [Wv; Wa] + b  ==  v @ Wv + a @ Wa + b
    acc = jnp.dot(v_ref[...], wv_ref[...], preferred_element_type=jnp.float32)
    acc = acc + jnp.dot(a_ref[...], wa_ref[...],
                        preferred_element_type=jnp.float32)
    acc = acc + b_ref[...]                 # [1, out] f32, broadcasts over rows
    out_ref[...] = acc.astype(out_ref.dtype)


def prepare_encoder_params(weight, bias, dv, compute_dtype=jnp.bfloat16):
    """One-time parameter prep (hoisted out of the forward hot path).

    weight: [out_dim, Dv + Da] (PyTorch nn.Linear layout), bias: [out_dim].
    Returns (wv [Dv, out], wa [Da, out], b2 [1, out] f32).  compute_dtype
    defaults to bf16 (native MXU input dtype on every TPU generation);
    pass None to keep the original weight dtype.
    """
    w_t = weight.T                              # [Dv+Da, out]
    wv, wa = w_t[:dv, :], w_t[dv:, :]
    if compute_dtype is not None:
        wv = wv.astype(compute_dtype)
        wa = wa.astype(compute_dtype)
    b2 = bias.reshape(1, -1).astype(jnp.float32)  # bias add stays f32
    return wv, wa, b2


_MAX_TILE_BF16 = 16384
_MAX_TILE_F32 = 8192


def _pick_batch_tile(B, Dv, Da, out_dim, act_dtype, out_dtype, budget_bytes):
    """Largest multiple-of-128 batch tile whose double-buffered, lane-padded
    working set fits the (generation-aware) VMEM budget, capped so the grid
    keeps >= 2 steps (feeds both v7x TensorCores)."""
    if B <= 256:
        return B                                # single full-size block
    act_b = jnp.dtype(act_dtype).itemsize
    out_b = jnp.dtype(out_dtype).itemsize
    # Padded bytes per tile row: double-buffered in/out blocks + the padded
    # f32 accumulator the dot produces before the store.
    per_row = (2 * _round_up(Dv, 128) * act_b
               + 2 * _round_up(Da, 128) * act_b
               + 2 * _round_up(out_dim, 128) * out_b
               + _round_up(out_dim, 128) * 4)
    tb = (budget_bytes // per_row) // 128 * 128
    cap = _MAX_TILE_BF16 if act_b <= 2 else _MAX_TILE_F32
    tb = min(tb, cap, _round_up(pl.cdiv(B, 2), 128))
    return max(tb, 128)


@functools.partial(jax.jit, static_argnames=("batch_tile", "out_dtype"))
def encoder_forward(vfeat, afeat, wv, wa, b2, batch_tile=None, out_dtype=None):
    """vfeat: [B, Dv], afeat: [B, Da], wv: [Dv, out], wa: [Da, out],
    b2: [1, out] f32.  Returns [B, out] in out_dtype (default: input dtype)."""
    B, Dv = vfeat.shape
    Ba, Da = afeat.shape
    assert Ba == B, "vfeat/afeat batch mismatch"
    out_dim = wv.shape[1]
    if out_dtype is None:
        out_dtype = jnp.result_type(vfeat.dtype, afeat.dtype)

    cap = _vmem_capacity_bytes()
    # Tile budget ~= 3/8 of physical VMEM: v7x 64 MiB -> 24 MiB,
    # v5e/v6e 128 MiB -> 48 MiB for the double-buffered per-step working set.
    budget = (cap * 3) // 8

    if batch_tile is None:
        tb = _pick_batch_tile(B, Dv, Da, out_dim, vfeat.dtype, out_dtype, budget)
    else:
        tb = int(batch_tile)
        assert tb >= B or tb % 16 == 0, \
            "batch_tile must be a multiple of 16 (or >= B)"
    tb = min(tb, B)

    grid = (pl.cdiv(B, tb),)

    # VMEM request from lane/sublane-PADDED footprints, with headroom, capped
    # below physical so Mosaic keeps internal scratch (v7x: <= 56 MiB).
    step_bytes = (2 * _padded_tile_bytes(tb, Dv, vfeat.dtype)
                  + 2 * _padded_tile_bytes(tb, Da, afeat.dtype)
                  + 2 * _padded_tile_bytes(tb, out_dim, out_dtype)
                  + _padded_tile_bytes(tb, out_dim, jnp.float32))
    w_bytes = 2 * (_padded_tile_bytes(Dv, out_dim, wv.dtype)
                   + _padded_tile_bytes(Da, out_dim, wa.dtype)
                   + _padded_tile_bytes(1, out_dim, jnp.float32))
    vmem_limit = int(1.25 * (step_bytes + w_bytes)) + (2 << 20)
    vmem_limit = max(16 << 20, min(vmem_limit, (cap * 7) // 8))

    return pl.pallas_call(
        _encoder_kernel,
        out_shape=jax.ShapeDtypeStruct((B, out_dim), out_dtype),
        grid_spec=pltpu.PrefetchScalarGridSpec(
            num_scalar_prefetch=0,
            grid=grid,
            in_specs=[
                pl.BlockSpec((tb, Dv), lambda i: (i, 0)),        # vfeat tile
                pl.BlockSpec((tb, Da), lambda i: (i, 0)),        # afeat tile
                pl.BlockSpec((Dv, out_dim), lambda i: (0, 0)),   # Wv (resident)
                pl.BlockSpec((Da, out_dim), lambda i: (0, 0)),   # Wa (resident)
                pl.BlockSpec((1, out_dim), lambda i: (0, 0)),    # bias (resident)
            ],
            out_specs=pl.BlockSpec((tb, out_dim), lambda i: (i, 0)),
        ),
        compiler_params=pltpu.CompilerParams(
            dimension_semantics=("parallel",),   # megacore-shard the batch loop
            vmem_limit_bytes=vmem_limit,
        ),
    )(vfeat, afeat, wv, wa, b2)


if __name__ == "__main__":
    # Small shapes consistent with forward(vfeat [B, Dv], afeat [B, Da]),
    # input_dim = Dv + Da, out_dim = 8.  B deliberately not a multiple of the
    # batch tile so the partial last block is exercised.
    B, Dv, Da, out_dim = 300, 192, 64, 8
    in_dim = Dv + Da

    key = jax.random.PRNGKey(0)
    k_v, k_a, k_w, k_b = jax.random.split(key, 4)

    vfeat = jax.random.normal(k_v, (B, Dv), dtype=jnp.float32)
    afeat = jax.random.normal(k_a, (B, Da), dtype=jnp.float32)

    # Deterministic nn.Linear-style init: U(-1/sqrt(in_dim), 1/sqrt(in_dim)).
    bound = 1.0 / (in_dim ** 0.5)
    weight = jax.random.uniform(k_w, (out_dim, in_dim), jnp.float32,
                                minval=-bound, maxval=bound)
    bias = jax.random.uniform(k_b, (out_dim,), jnp.float32,
                              minval=-bound, maxval=bound)

    # ---------------- bf16 path (default: halves HBM traffic) ----------------
    wv16, wa16, b2 = prepare_encoder_params(weight, bias, Dv)  # bf16 weights
    v16 = vfeat.astype(jnp.bfloat16)
    a16 = afeat.astype(jnp.bfloat16)

    # Reference in f32 from the same bf16-rounded operands (isolates kernel error).
    ref16 = (jnp.concatenate([v16.astype(jnp.float32),
                              a16.astype(jnp.float32)], axis=1)
             @ jnp.concatenate([wv16, wa16], axis=0).astype(jnp.float32)) + bias

    # Explicit small tile -> 3 grid steps, partial (44-row) last block.
    out_a = jax.block_until_ready(
        encoder_forward(v16, a16, wv16, wa16, b2, batch_tile=128))
    # Auto tile (generation-aware VMEM budget, >= 2 grid steps for megacore).
    out_b = jax.block_until_ready(
        encoder_forward(v16, a16, wv16, wa16, b2))

    assert out_a.shape == (B, out_dim) and out_a.dtype == jnp.bfloat16
    assert out_b.shape == (B, out_dim) and out_b.dtype == jnp.bfloat16
    assert jnp.allclose(out_a.astype(jnp.float32), ref16, atol=3e-2, rtol=3e-2)
    assert jnp.allclose(out_b.astype(jnp.float32), ref16, atol=3e-2, rtol=3e-2)

    # ---------------- f32 path (tighter check of the kernel math) ------------
    wv32, wa32, _ = prepare_encoder_params(weight, bias, Dv, compute_dtype=None)
    out_c = jax.block_until_ready(
        encoder_forward(vfeat, afeat, wv32, wa32, b2, batch_tile=128))
    ref32 = jnp.dot(jnp.concatenate([vfeat, afeat], axis=1), weight.T,
                    precision=jax.lax.Precision.HIGHEST) + bias
    assert out_c.shape == (B, out_dim) and out_c.dtype == jnp.float32
    assert jnp.allclose(out_c, ref32, atol=1e-3, rtol=1e-3)

    print("KERNEL_OK")
</pallas_src>

<mosaic_0001>
module attributes {stable_mosaic.version = 11 : i64} {
  func.func @_encoder_kernel(%arg0: i32, %arg1: memref<128x192xbf16, #tpu.memory_space<vmem>>, %arg2: memref<128x64xbf16, #tpu.memory_space<vmem>>, %arg3: memref<192x8xbf16, #tpu.memory_space<vmem>>, %arg4: memref<64x8xbf16, #tpu.memory_space<vmem>>, %arg5: memref<1x8xf32, #tpu.memory_space<vmem>>, %arg6: memref<128x8xbf16, #tpu.memory_space<vmem>>) attributes {dimension_semantics = [#tpu.dimension_semantics<parallel>], iteration_bounds = array<i64: 3>, scalar_prefetch = 0 : i64, scratch_operands = 0 : i64, tpu.core_type = #tpu.core_type<tc>, window_params = [{transform_indices = @transform_0, window_bounds = array<i64: 128, 192>}, {transform_indices = @transform_1, window_bounds = array<i64: 128, 64>}, {pipeline_mode = #tpu.pipeline_mode<synchronous>, transform_indices = @transform_2, window_bounds = array<i64: 192, 8>}, {pipeline_mode = #tpu.pipeline_mode<synchronous>, transform_indices = @transform_3, window_bounds = array<i64: 64, 8>}, {pipeline_mode = #tpu.pipeline_mode<synchronous>, transform_indices = @transform_4, window_bounds = array<i64: 1, 8>}, {transform_indices = @transform_5, window_bounds = array<i64: 128, 8>}]} {
    %c0 = arith.constant 0 : index
    %c0_0 = arith.constant 0 : index
    %0 = vector.load %arg1[%c0, %c0_0] : memref<128x192xbf16, #tpu.memory_space<vmem>>, vector<128x192xbf16>
    %c0_1 = arith.constant 0 : index
    %c0_2 = arith.constant 0 : index
    %1 = vector.load %arg3[%c0_1, %c0_2] : memref<192x8xbf16, #tpu.memory_space<vmem>>, vector<192x8xbf16>
    %cst = arith.constant dense<0.000000e+00> : vector<128x8xf32>
    %2 = tpu.matmul %0, %1, %cst {dimension_numbers = #tpu.dot_dimension_numbers<[1], [0], [0], [1], [0, 0, 1, 1], [], []>} : vector<128x192xbf16>, vector<192x8xbf16>, vector<128x8xf32> -> vector<128x8xf32>
    %c0_3 = arith.constant 0 : index
    %c0_4 = arith.constant 0 : index
    %3 = vector.load %arg2[%c0_3, %c0_4] : memref<128x64xbf16, #tpu.memory_space<vmem>>, vector<128x64xbf16>
    %c0_5 = arith.constant 0 : index
    %c0_6 = arith.constant 0 : index
    %4 = vector.load %arg4[%c0_5, %c0_6] : memref<64x8xbf16, #tpu.memory_space<vmem>>, vector<64x8xbf16>
    %cst_7 = arith.constant dense<0.000000e+00> : vector<128x8xf32>
    %5 = tpu.matmul %3, %4, %cst_7 {dimension_numbers = #tpu.dot_dimension_numbers<[1], [0], [0], [1], [0, 0, 1, 1], [], []>} : vector<128x64xbf16>, vector<64x8xbf16>, vector<128x8xf32> -> vector<128x8xf32>
    %6 = arith.addf %2, %5 : vector<128x8xf32>
    %c0_8 = arith.constant 0 : index
    %c0_9 = arith.constant 0 : index
    %7 = vector.load %arg5[%c0_8, %c0_9] : memref<1x8xf32, #tpu.memory_space<vmem>>, vector<1x8xf32>
    %8 = vector.broadcast %7 : vector<1x8xf32> to vector<128x8xf32>
    %9 = arith.addf %6, %8 : vector<128x8xf32>
    %10 = arith.truncf %9 : vector<128x8xf32> to vector<128x8xbf16>
    %c0_10 = arith.constant 0 : index
    %c0_11 = arith.constant 0 : index
    %11 = vector.load %arg6[%c0_10, %c0_11] : memref<128x8xbf16, #tpu.memory_space<vmem>>, vector<128x8xbf16>
    tpu.vector_store %arg6[%c0_10, %c0_11], %10 {strides = array<i32>} : memref<128x8xbf16, #tpu.memory_space<vmem>>, vector<128x8xbf16>,
    return
  }
  func.func @transform_0(%arg0: i32) -> (i32, i32) {
    %c0_i32 = arith.constant 0 : i32
    %c0_i32_0 = arith.constant 0 : i32
    return %arg0, %c0_i32 : i32, i32
  }
  func.func @transform_1(%arg0: i32) -> (i32, i32) {
    %c0_i32 = arith.constant 0 : i32
    %c0_i32_0 = arith.constant 0 : i32
    return %arg0, %c0_i32 : i32, i32
  }
  func.func @transform_2(%arg0: i32) -> (i32, i32) {
    %c0_i32 = arith.constant 0 : i32
    %c0_i32_0 = arith.constant 0 : i32
    %c0_i32_1 = arith.constant 0 : i32
    return %c0_i32, %c0_i32_0 : i32, i32
  }
  func.func @transform_3(%arg0: i32) -> (i32, i32) {
    %c0_i32 = arith.constant 0 : i32
    %c0_i32_0 = arith.constant 0 : i32
    %c0_i32_1 = arith.constant 0 : i32
    return %c0_i32, %c0_i32_0 : i32, i32
  }
  func.func @transform_4(%arg0: i32) -> (i32, i32) {
    %c0_i32 = arith.constant 0 : i32
    %c0_i32_0 = arith.constant 0 : i32
    %c0_i32_1 = arith.constant 0 : i32
    return %c0_i32, %c0_i32_0 : i32, i32
  }
  func.func @transform_5(%arg0: i32) -> (i32, i32) {
    %c0_i32 = arith.constant 0 : i32
    %c0_i32_0 = arith.constant 0 : i32
    return %arg0, %c0_i32 : i32, i32
  }
}

</mosaic_0001>

<llo_original>
// kernel: encoder_forward.1
$region0: #{encoder_forward.1}
  #allocation0 [shape = 'u32[]', space=smem, size = 0x4, offset = 0x4, fixed_abs, tag = 'smem constant byte address 0x4 - core index']
  #allocation1 [shape = 'u32[144,128]{1,0:T(1,128)}', space=vmem, size = 0x12000, scoped, tag = 'internal scratch']
  %s0 = inlined_call_operand.vmem [shape: bf16[300,192], index: 0, kind: input, shape index: {}]
  %s1 = inlined_call_operand.vmem [shape: bf16[300,64], index: 1, kind: input, shape index: {}]
  %s2 = inlined_call_operand.vmem [shape: bf16[192,8], index: 2, kind: input, shape index: {}]
  %s3 = inlined_call_operand.vmem [shape: bf16[64,8], index: 3, kind: input, shape index: {}]
  %s4 = inlined_call_operand.vmem [shape: f32[1,8], index: 4, kind: input, shape index: {}]
  %s5 = inlined_call_operand.vmem [shape: bf16[300,8], index: 5, kind: output, shape index: {}]
  %s6 = sld [smem:[#allocation0]]
  $region97: #{encoder_forward.1} parent=0
    _
  %s8 = ssub.s32 1, %s6
  %s9 = scalar_select 0, %s8, %s6
  $region1: #{encoder_forward.1} parent=0
    #allocation2 [shape = 'u8[65536]{0}', space=vmem, size = 0x10000, scoped, tag = 'output window, operand 0']
    loop: start=0, step=1, limit=5
    $region2: #{encoder_forward.1} parent=1 // loop_pre_header
      _
    $region3: #{encoder_forward.1} parent=1 // loop_header
      %s11 = sphi 0, %s15
      %p12 = scmp.ge.s32.totalorder %s11, 5
      %s21 = sphi 0, %s23
      %s24 = sphi 0, %s21
      %s25 = sphi 0, %s24
      %s41 = sphi 0, %s25
      %s47 = sphi 0, %s49
      %s50 = sphi 0, %s47
      %s51 = sphi 0, %s50
      %s67 = sphi 0, %s51
      %s71 = sphi 0, %s71
      %s73 = sphi 0, %s71
      %s74 = sphi 0, %s73
      %s88 = sphi 0, %s74
      %s92 = sphi 0, %s92
      %s94 = sphi 0, %s92
      %s95 = sphi 0, %s94
      %s109 = sphi 0, %s95
      %s113 = sphi 0, %s113
      %s115 = sphi 0, %s113
      %s116 = sphi 0, %s115
      %s130 = sphi 0, %s116
      %s136 = sphi 0, %s138
      %s139 = sphi 0, %s136
      %s140 = sphi 0, %s139
      %s156 = sphi 0, %s140
    $region4: #{encoder_forward.1} parent=1 // loop_header_branch
      %14 = sbr.rel (%p12) target = $region8
    $region5: #{encoder_forward.1} parent=1 // loop_body
      %s16 = ssub.s32 %s11, 1
      %s17 = ssub.s32 %s11, 2
      %s18 = sadd.s32 %s11, 1
      %s19 = ssub.s32 %s11, %s18
      %p20 = scmp.eq.s32.totalorder %s19, 0
      %s22 = sadd.s32 %s21, 1
      %s23 = scalar_select %p20, %s21, %s22
      %p26 = pneg %p20
      %p27 = scmp.eq.s32.totalorder %s11, 2
      %p28 = por %p26, %p27
      %p29 = scmp.ne.s32.totalorder %s21, %s24
      %p30 = scmp.eq.s32.totalorder %s11, 0
      %p31 = por %p29, %p30
      %p32 = scmp.ne.s32.totalorder %s21, %s24
      %p33 = scmp.eq.s32.totalorder %s16, 2
      %p34 = por %p32, %p33
      %p35 = scmp.ne.s32.totalorder %s24, %s25
      %p36 = scmp.eq.s32.totalorder %s16, 0
      %p37 = por %p35, %p36
      %p38 = scmp.ne.s32.totalorder %s24, %s25
      %p39 = scmp.eq.s32.totalorder %s17, 2
      %p40 = por %p38, %p39
      %p42 = scmp.ne.s32.totalorder %s25, %s41
      %p43 = scmp.eq.s32.totalorder %s17, 0
      %p44 = por %p42, %p43
      %s45 = ssub.s32 %s11, %s18
      %p46 = scmp.eq.s32.totalorder %s45, 0
      %s48 = sadd.s32 %s47, 1
      %s49 = scalar_select %p46, %s47, %s48
      %p52 = pneg %p46
      %p53 = scmp.eq.s32.totalorder %s11, 2
      %p54 = por %p52, %p53
      %p55 = scmp.ne.s32.totalorder %s47, %s50
      %p56 = scmp.eq.s32.totalorder %s11, 0
      %p57 = por %p55, %p56
      %p58 = scmp.ne.s32.totalorder %s47, %s50
      %p59 = scmp.eq.s32.totalorder %s16, 2
      %p60 = por %p58, %p59
      %p61 = scmp.ne.s32.totalorder %s50, %s51
      %p62 = scmp.eq.s32.totalorder %s16, 0
      %p63 = por %p61, %p62
      %p64 = scmp.ne.s32.totalorder %s50, %s51
      %p65 = scmp.eq.s32.totalorder %s17, 2
      %p66 = por %p64, %p65
      %p68 = scmp.ne.s32.totalorder %s51, %s67
      %p69 = scmp.eq.s32.totalorder %s17, 0
      %p70 = por %p68, %p69
      %s72 = sadd.s32 %s71, 1
      %p75 = scmp.eq.s32.totalorder %s11, 2
      %p76 = scmp.ne.s32.totalorder %s71, %s73
      %p77 = scmp.eq.s32.totalorder %s11, 0
      %p78 = por %p76, %p77
      %p79 = scmp.ne.s32.totalorder %s71, %s73
      %p80 = scmp.eq.s32.totalorder %s16, 2
      %p81 = por %p79, %p80
      %p82 = scmp.ne.s32.totalorder %s73, %s74
      %p83 = scmp.eq.s32.totalorder %s16, 0
      %p84 = por %p82, %p83
      %p85 = scmp.ne.s32.totalorder %s73, %s74
      %p86 = scmp.eq.s32.totalorder %s17, 2
      %p87 = por %p85, %p86
      %p89 = scmp.ne.s32.totalorder %s74, %s88
      %p90 = scmp.eq.s32.totalorder %s17, 0
      %p91 = por %p89, %p90
      %s93 = sadd.s32 %s92, 1
      %p96 = scmp.eq.s32.totalorder %s11, 2
      %p97 = scmp.ne.s32.totalorder %s92, %s94
      %p98 = scmp.eq.s32.totalorder %s11, 0
      %p99 = por %p97, %p98
      %p100 = scmp.ne.s32.totalorder %s92, %s94
      %p101 = scmp.eq.s32.totalorder %s16, 2
      %p102 = por %p100, %p101
      %p103 = scmp.ne.s32.totalorder %s94, %s95
      %p104 = scmp.eq.s32.totalorder %s16, 0
      %p105 = por %p103, %p104
      %p106 = scmp.ne.s32.totalorder %s94, %s95
      %p107 = scmp.eq.s32.totalorder %s17, 2
      %p108 = por %p106, %p107
      %p110 = scmp.ne.s32.totalorder %s95, %s109
      %p111 = scmp.eq.s32.totalorder %s17, 0
      %p112 = por %p110, %p111
      %s114 = sadd.s32 %s113, 1
      %p117 = scmp.eq.s32.totalorder %s11, 2
      %p118 = scmp.ne.s32.totalorder %s113, %s115
      %p119 = scmp.eq.s32.totalorder %s11, 0
      %p120 = por %p118, %p119
      %p121 = scmp.ne.s32.totalorder %s113, %s115
      %p122 = scmp.eq.s32.totalorder %s16, 2
      %p123 = por %p121, %p122
      %p124 = scmp.ne.s32.totalorder %s115, %s116
      %p125 = scmp.eq.s32.totalorder %s16, 0
      %p126 = por %p124, %p125
      %p127 = scmp.ne.s32.totalorder %s115, %s116
      %p128 = scmp.eq.s32.totalorder %s17, 2
      %p129 = por %p127, %p128
      %p131 = scmp.ne.s32.totalorder %s116, %s130
      %p132 = scmp.eq.s32.totalorder %s17, 0
      %p133 = por %p131, %p132
      %s134 = ssub.s32 %s11, %s18
      %p135 = scmp.eq.s32.totalorder %s134, 0
      %s137 = sadd.s32 %s136, 1
      %s138 = scalar_select %p135, %s136, %s137
      %p141 = pneg %p135
      %p142 = scmp.eq.s32.totalorder %s11, 2
      %p143 = por %p141, %p142
      %p144 = scmp.ne.s32.totalorder %s136, %s139
      %p145 = scmp.eq.s32.totalorder %s11, 0
      %p146 = por %p144, %p145
      %p147 = scmp.ne.s32.totalorder %s136, %s139
      %p148 = scmp.eq.s32.totalorder %s16, 2
      %p149 = por %p147, %p148
      %p150 = scmp.ne.s32.totalorder %s139, %s140
      %p151 = scmp.eq.s32.totalorder %s16, 0
      %p152 = por %p150, %p151
      %p153 = scmp.ne.s32.totalorder %s139, %s140
      %p154 = scmp.eq.s32.totalorder %s17, 2
      %p155 = por %p153, %p154
      %p157 = scmp.ne.s32.totalorder %s140, %s156
      %p158 = scmp.eq.s32.totalorder %s17, 0
      %p159 = por %p157, %p158
      %p160 = scmp.le.s32.totalorder 1, %s11
      %p161 = scmp.lt.s32.totalorder %s11, 4
      %p162 = pnand %p160, %p161
      %p163 = pneg %p162
      // Predicated region
      $region9: #{encoder_forward.1} parent=5 // pred_check
        _
      $region10: #{encoder_forward.1} parent=5 // pred_check_branch
        %165 = sbr.rel (%p162) target = $region12
      $region11: #{encoder_forward.1} parent=5 // pred_region
        %s166 = ssub.s32 %s11, 1
        // Predicated region
        $region13: #{encoder_forward.1} parent=11 // pred_check
          %p167 = pneg %p84
        $region14: #{encoder_forward.1} parent=11 // pred_check_branch
          %169 = sbr.rel (%p167) target = $region16
        $region15: #{encoder_forward.1} parent=11 // pred_region
          _
        $region16: #{encoder_forward.1} parent=11 // pred_fallthru
          _
        // Predicated region
        $region17: #{encoder_forward.1} parent=11 // pred_check
          %p170 = pneg %p105
        $region18: #{encoder_forward.1} parent=11 // pred_check_branch
          %172 = sbr.rel (%p170) target = $region20
        $region19: #{encoder_forward.1} parent=11 // pred_region
          _
        $region20: #{encoder_forward.1} parent=11 // pred_fallthru
          _
        // Predicated region
        $region21: #{encoder_forward.1} parent=11 // pred_check
          %p173 = pneg %p126
        $region22: #{encoder_forward.1} parent=11 // pred_check_branch
          %175 = sbr.rel (%p173) target = $region24
        $region23: #{encoder_forward.1} parent=11 // pred_region
          _
        $region24: #{encoder_forward.1} parent=11 // pred_fallthru
          _
      $region12: #{encoder_forward.1} parent=5 // pred_fallthru
        _
      %p176 = scmp.lt.s32.totalorder %s11, 3
      // Predicated region
      $region25: #{encoder_forward.1} parent=5 // pred_check
        %p177 = pneg %p176
      $region26: #{encoder_forward.1} parent=5 // pred_check_branch
        %179 = sbr.rel (%p177) target = $region28
      $region27: #{encoder_forward.1} parent=5 // pred_region
        // Predicated region
        $region29: #{encoder_forward.1} parent=27 // pred_check
          %p180 = pneg %p31
        $region30: #{encoder_forward.1} parent=27 // pred_check_branch
          %182 = sbr.rel (%p180) target = $region32
        $region31: #{encoder_forward.1} parent=27 // pred_region
          %s183 = smul.u32 16, %s11
          %s184 = ssub.s32 38, %s183
          %p185 = scmp.lt.s32.totalorder %s184, 16
          %s186 = scalar_select %p185, %s184, 16
          %s187 = smul.u32 64, %s186
          %s188 = smul.u32 %s187, 2
          %p189 = scmp.lt.s32.totalorder %s183, 37
          %s190 = scalar_select %p189, %s183, 37
          %s191 = smul.addr %s190, 2
          %s192 = smul.addr %s191, 4
          %s193 = scalar_lea.vmem %s0, %s192
          %s194 = smul.u32 16, %s11
          %s195 = ssub.s32 38, %s194
          %p196 = scmp.lt.s32.totalorder %s195, 16
          %s197 = scalar_select %p196, %s195, 16
          %s198 = smul.u32 64, %s197
          %s199 = smul.u32 %s198, 2
        $region32: #{encoder_forward.1} parent=27 // pred_fallthru
          _
        // Predicated region
        $region33: #{encoder_forward.1} parent=27 // pred_check
          %p200 = pneg %p57
        $region34: #{encoder_forward.1} parent=27 // pred_check_branch
          %202 = sbr.rel (%p200) target = $region36
        $region35: #{encoder_forward.1} parent=27 // pred_region
          %s203 = smul.u32 16, %s11
          %s204 = ssub.s32 38, %s203
          %p205 = scmp.lt.s32.totalorder %s204, 16
          %s206 = scalar_select %p205, %s204, 16
          %s207 = smul.u32 64, %s206
          %p208 = scmp.lt.s32.totalorder %s203, 37
          %s209 = scalar_select %p208, %s203, 37
          %s210 = smul.addr %s209, 4
          %s211 = scalar_lea.vmem %s1, %s210
          %s212 = smul.u32 16, %s11
          %s213 = ssub.s32 38, %s212
          %p214 = scmp.lt.s32.totalorder %s213, 16
          %s215 = scalar_select %p214, %s213, 16
          %s216 = smul.u32 64, %s215
        $region36: #{encoder_forward.1} parent=27 // pred_fallthru
          _
      $region28: #{encoder_forward.1} parent=5 // pred_fallthru
        _
      %p217 = scmp.le.s32.totalorder 1, %s11
      %p218 = scmp.lt.s32.totalorder %s11, 4
      %p219 = pnand %p217, %p218
      %p220 = pneg %p219
      // Predicated region
      $region37: #{encoder_forward.1} parent=5 // pred_check
        _
      $region38: #{encoder_forward.1} parent=5 // pred_check_branch
        %222 = sbr.rel (%p219) target = $region40
      $region39: #{encoder_forward.1} parent=5 // pred_region
        %s223 = ssub.s32 %s11, 1
        %s224 = smul.u32 16, %s16
        %s225 = ssub.s32 38, %s224
        %p226 = scmp.lt.s32.totalorder %s225, 16
        %s227 = scalar_select %p226, %s225, 16
        %s228 = smul.u32 64, %s227
        %s229 = smul.u32 %s228, 2
        %p230 = scmp.lt.s32.totalorder %s224, 37
        %s231 = scalar_select %p230, %s224, 37
        %s232 = smul.addr %s231, 2
        %s233 = smul.addr %s232, 4
        %s234 = scalar_lea.vmem %s0, %s233
        %p235 = pneg %p37
        %p236 = pneg %p34
        %s237 = smul.u32 16, %s16
        %s238 = ssub.s32 38, %s237
        %p239 = scmp.lt.s32.totalorder %s238, 16
        %s240 = scalar_select %p239, %s238, 16
        %s241 = smul.u32 64, %s240
        %p242 = scmp.lt.s32.totalorder %s237, 37
        %s243 = scalar_select %p242, %s237, 37
        %s244 = smul.addr %s243, 4
        %s245 = scalar_lea.vmem %s1, %s244
        %p246 = pneg %p63
        %p247 = pneg %p60
        %p248 = pneg %p84
        %p249 = pneg %p81
        %p250 = pneg %p105
        %p251 = pneg %p102
        %p252 = pneg %p126
        %p253 = pneg %p123
        %p254 = pneg %p152
        %p255 = pneg %p149
        %s256 = sand.u32 %s139, 1
        %s257 = sand.u32 %s139, 1
        %s258 = smul.addr %s257, 64
        %s259 = scalar_lea.vmem [#allocation2], %s258
        %s260 = smul.u32 16, %s16
        %s261 = ssub.s32 38, %s260
        %p262 = scmp.lt.s32.totalorder %s261, 16
        %s263 = scalar_select %p262, %s261, 16
        %s264 = smul.u32 64, %s263
        %s265 = smul.u32 %s264, 2
        %p266 = scmp.lt.s32.totalorder %s260, 37
        %s267 = scalar_select %p266, %s260, 37
        %s268 = smul.addr %s267, 2
        %s269 = smul.addr %s268, 4
        %s270 = scalar_lea.vmem %s0, %s269
        %s271 = smul.u32 16, %s16
        %s272 = ssub.s32 38, %s271
        %p273 = scmp.lt.s32.totalorder %s272, 16
        %s274 = scalar_select %p273, %s272, 16
        %s275 = smul.u32 64, %s274
        %s276 = smul.u32 %s275, 2
        %s277 = smul.u32 16, %s16
        %s278 = ssub.s32 38, %s277
        %p279 = scmp.lt.s32.totalorder %s278, 16
        %s280 = scalar_select %p279, %s278, 16
        %s281 = smul.u32 64, %s280
        %p282 = scmp.lt.s32.totalorder %s277, 37
        %s283 = scalar_select %p282, %s277, 37
        %s284 = smul.addr %s283, 4
        %s285 = scalar_lea.vmem %s1, %s284
        %s286 = smul.u32 16, %s16
        %s287 = ssub.s32 38, %s286
        %p288 = scmp.lt.s32.totalorder %s287, 16
        %s289 = scalar_select %p288, %s287, 16
        %s290 = smul.u32 64, %s289
        %s291 = smul.u32 16, %s16
        %s292 = ssub.s32 38, %s291
        %p293 = scmp.lt.s32.totalorder %s292, 16
        %s294 = scalar_select %p293, %s292, 16
        %s295 = smul.u32 64, %s294
        %v297 = vld [vmem:[%s270] sm:$0xff]
        %v298 = vld [vmem:[%s270 + $0x8] sm:$0xff]
        %v299 = vld [vmem:[%s270 + $0x10] sm:$0xff]
        %v300 = vld [vmem:[%s270 + $0x18] sm:$0xff]
        %v301 = vld [vmem:[%s270 + $0x20] sm:$0xff]
        %v302 = vld [vmem:[%s270 + $0x28] sm:$0xff]
        %v303 = vld [vmem:[%s270 + $0x30] sm:$0xff]
        %v304 = vld [vmem:[%s270 + $0x38] sm:$0xff]
        %v305 = vld [vmem:[%s270 + $0x40] sm:$0xff]
        %v306 = vld [vmem:[%s270 + $0x48] sm:$0xff]
        %v307 = vld [vmem:[%s270 + $0x50] sm:$0xff]
        %v308 = vld [vmem:[%s270 + $0x58] sm:$0xff]
        %v309 = vld [vmem:[%s270 + $0x60] sm:$0xff]
        %v310 = vld [vmem:[%s270 + $0x68] sm:$0xff]
        %v311 = vld [vmem:[%s270 + $0x70] sm:$0xff]
        %v312 = vld [vmem:[%s270 + $0x78] sm:$0xff]
        %v313 = vld [vmem:[%s2] sm:$0xf]
        %v314 = vld [vmem:[%s2 + $0x4] sm:$0xf]
        %v315 = vld [vmem:[%s2 + $0x8] sm:$0xf]
        %v316 = vld [vmem:[%s2 + $0xc] sm:$0xf]
        %v317 = vld [vmem:[%s2 + $0x10] sm:$0xf]
        %v318 = vld [vmem:[%s2 + $0x14] sm:$0xf]
        %v319 = vld [vmem:[%s2 + $0x18] sm:$0xf]
        %v320 = vld [vmem:[%s2 + $0x1c] sm:$0xf]
        %v321 = vld [vmem:[%s2 + $0x20] sm:$0xf]
        %v322 = vld [vmem:[%s2 + $0x24] sm:$0xf]
        %v323 = vld [vmem:[%s2 + $0x28] sm:$0xf]
        %v324 = vld [vmem:[%s2 + $0x2c] sm:$0xf]
        %v325 = vld [vmem:[%s2 + $0x30] sm:$0xf]
        %v326 = vld [vmem:[%s2 + $0x34] sm:$0xf]
        %v327 = vld [vmem:[%s2 + $0x38] sm:$0xf]
        %v328 = vld [vmem:[%s2 + $0x3c] sm:$0xf]
        %v329 = vld [vmem:[%s2 + $0x40] sm:$0xf]
        %v330 = vld [vmem:[%s2 + $0x44] sm:$0xf]
        %v331 = vld [vmem:[%s2 + $0x48] sm:$0xf]
        %v332 = vld [vmem:[%s2 + $0x4c] sm:$0xf]
        %v333 = vld [vmem:[%s2 + $0x50] sm:$0xf]
        %v334 = vld [vmem:[%s2 + $0x54] sm:$0xf]
        %v335 = vld [vmem:[%s2 + $0x58] sm:$0xf]
        %v336 = vld [vmem:[%s2 + $0x5c] sm:$0xf]
        %v337 = vld [vmem:[%s285] sm:$0xf]
        %v338 = vld [vmem:[%s285 + $0x4] sm:$0xf]
        %v339 = vld [vmem:[%s285 + $0x8] sm:$0xf]
        %v340 = vld [vmem:[%s285 + $0xc] sm:$0xf]
        %v341 = vld [vmem:[%s285 + $0x10] sm:$0xf]
        %v342 = vld [vmem:[%s285 + $0x14] sm:$0xf]
        %v343 = vld [vmem:[%s285 + $0x18] sm:$0xf]
        %v344 = vld [vmem:[%s285 + $0x1c] sm:$0xf]
        %v345 = vld [vmem:[%s285 + $0x20] sm:$0xf]
        %v346 = vld [vmem:[%s285 + $0x24] sm:$0xf]
        %v347 = vld [vmem:[%s285 + $0x28] sm:$0xf]
        %v348 = vld [vmem:[%s285 + $0x2c] sm:$0xf]
        %v349 = vld [vmem:[%s285 + $0x30] sm:$0xf]
        %v350 = vld [vmem:[%s285 + $0x34] sm:$0xf]
        %v351 = vld [vmem:[%s285 + $0x38] sm:$0xf]
        %v352 = vld [vmem:[%s285 + $0x3c] sm:$0xf]
        %v353 = vld [vmem:[%s3] sm:$0xf]
        %v354 = vld [vmem:[%s3 + $0x4] sm:$0xf]
        %v355 = vld [vmem:[%s3 + $0x8] sm:$0xf]
        %v356 = vld [vmem:[%s3 + $0xc] sm:$0xf]
        %v357 = vld [vmem:[%s3 + $0x10] sm:$0xf]
        %v358 = vld [vmem:[%s3 + $0x14] sm:$0xf]
        %v359 = vld [vmem:[%s3 + $0x18] sm:$0xf]
        %v360 = vld [vmem:[%s3 + $0x1c] sm:$0xf]
        %v377 = vunpack.c.l.b16 %v337
        %v378 = vunpack.c.l.b16 %v338
        %v379 = vunpack.c.l.b16 %v339
        %v380 = vunpack.c.l.b16 %v340
        %v381 = vunpack.c.l.b16 %v341
        %v382 = vunpack.c.l.b16 %v342
        %v383 = vunpack.c.l.b16 %v343
        %v384 = vunpack.c.l.b16 %v344
        %v385 = vunpack.c.l.b16 %v345
        %v386 = vunpack.c.l.b16 %v346
        %v387 = vunpack.c.l.b16 %v347
        %v388 = vunpack.c.l.b16 %v348
        %v389 = vunpack.c.l.b16 %v349
        %v390 = vunpack.c.l.b16 %v350
        %v391 = vunpack.c.l.b16 %v351
        %v392 = vunpack.c.l.b16 %v352
        %v393 = vpack.c.b16 %v378, %v377
        %v394 = vpack.c.b16 %v380, %v379
        %v395 = vpack.c.b16 %v382, %v381
        %v396 = vpack.c.b16 %v384, %v383
        %v397 = vpack.c.b16 %v386, %v385
        %v398 = vpack.c.b16 %v388, %v387
        %v399 = vpack.c.b16 %v390, %v389
        %v400 = vpack.c.b16 %v392, %v391
        %v409 = vunpack.c.l.b16 %v353
        %v410 = vunpack.c.l.b16 %v354
        %v411 = vunpack.c.l.b16 %v355
        %v412 = vunpack.c.l.b16 %v356
        %v413 = vunpack.c.l.b16 %v357
        %v414 = vunpack.c.l.b16 %v358
        %v415 = vunpack.c.l.b16 %v359
        %v416 = vunpack.c.l.b16 %v360
        %v417 = vpack.c.b16 %v410, %v409
        %v418 = vpack.c.b16 %v412, %v411
        %v419 = vpack.c.b16 %v414, %v413
        %v420 = vpack.c.b16 %v416, %v415
        %vm425 = vcmask 523264
        %v427 = vsel %vm425, %v393, 0
        %v430 = vsel %vm425, %v394, 0
        %v433 = vsel %vm425, %v395, 0
        %v436 = vsel %vm425, %v396, 0
        %v439 = vsel %vm425, %v397, 0
        %v442 = vsel %vm425, %v398, 0
        %v445 = vsel %vm425, %v399, 0
        %v448 = vsel %vm425, %v400, 0
        %450 = vmatprep.subr.bf16.mxu0 0
        %451 = vmatpush1.bf16.msra.mxu0 0
        %452 = vmatprep.subr.bf16.mxu0 0
        %453 = vmatpush1.bf16.msra.mxu0 0
        %454 = vmatprep.subr.bf16.mxu0 0
        %455 = vmatpush1.bf16.msra.mxu0 0
        %456 = vmatprep.subr.bf16.mxu0 0
        %457 = vmatpush1.bf16.msra.mxu0 0
        %458 = vmatprep.subr.bf16.mxu0 0
        %459 = vmatpush1.bf16.msra.mxu0 %v420
        %460 = vmatprep.subr.bf16.mxu0 0
        %461 = vmatpush1.bf16.msra.mxu0 %v419
        %462 = vmatprep.subr.bf16.mxu0 0
        %463 = vmatpush1.bf16.msra.mxu0 %v418
        %464 = vmatprep.subr.bf16.mxu0 0
        %465 = vmatpush1.bf16.msra.mxu0 %v417
        %466 = vmatprep.subr.bf16.mxu0 0
        %467 = vmatpush2.bf16.msra.mxu0 0
        %468 = vmatprep.subr.bf16.mxu0 0
        %469 = vmatpush2.bf16.msra.mxu0 0
        %470 = vmatprep.subr.bf16.mxu0 0
        %471 = vmatpush2.bf16.msra.mxu0 0
        %472 = vmatprep.subr.bf16.mxu0 0
        %473 = vmatpush2.bf16.msra.mxu0 0
        %474 = vmatprep.subr.bf16.mxu0 0
        %475 = vmatpush2.bf16.msra.mxu0 0
        %476 = vmatprep.subr.bf16.mxu0 0
        %477 = vmatpush2.bf16.msra.mxu0 0
        %478 = vmatprep.subr.bf16.mxu0 0
        %479 = vmatpush2.bf16.msra.mxu0 0
        %480 = vmatprep.subr.bf16.mxu0 0
        %481 = vmatpush2.bf16.msra.mxu0 0
        %482 = vmatprep.mubr.bf16.mxu0 0
        %483 = vmatmul.mubr.bf16.gmra.mxu0 %v427
        %v484 = vpop.f32.mrf.mxu0
        %v485 = vadd.f32 0.0, %v484
        %v486 = vpop.f32.mrf.mxu0
        %v487 = vpop.f32.mrf.mxu0
        %v488 = vadd.f32 0.0, %v487
        %v489 = vpop.f32.mrf.mxu0
        %490 = vmatprep.mubr.bf16.mxu0 0
        %491 = vmatmul.mubr.bf16.gmra.mxu0 %v430
        %v492 = vpop.f32.mrf.mxu0
        %v493 = vadd.f32 0.0, %v492
        %v494 = vpop.f32.mrf.mxu0
        %v495 = vpop.f32.mrf.mxu0
        %v496 = vadd.f32 0.0, %v495
        %v497 = vpop.f32.mrf.mxu0
        %498 = vmatprep.mubr.bf16.mxu0 0
        %499 = vmatmul.mubr.bf16.gmra.mxu0 %v433
        %v500 = vpop.f32.mrf.mxu0
        %v501 = vadd.f32 0.0, %v500
        %v502 = vpop.f32.mrf.mxu0
        %v503 = vpop.f32.mrf.mxu0
        %v504 = vadd.f32 0.0, %v503
        %v505 = vpop.f32.mrf.mxu0
        %506 = vmatprep.mubr.bf16.mxu0 0
        %507 = vmatmul.mubr.bf16.gmra.mxu0 %v436
        %v508 = vpop.f32.mrf.mxu0
        %v509 = vadd.f32 0.0, %v508
        %v510 = vpop.f32.mrf.mxu0
        %v511 = vpop.f32.mrf.mxu0
        %v512 = vadd.f32 0.0, %v511
        %v513 = vpop.f32.mrf.mxu0
        %514 = vmatprep.mubr.bf16.mxu0 0
        %515 = vmatmul.mubr.bf16.gmra.mxu0 %v439
        %v516 = vpop.f32.mrf.mxu0
        %v517 = vadd.f32 0.0, %v516
        %v518 = vpop.f32.mrf.mxu0
        %v519 = vpop.f32.mrf.mxu0
        %v520 = vadd.f32 0.0, %v519
        %v521 = vpop.f32.mrf.mxu0
        %522 = vmatprep.mubr.bf16.mxu0 0
        %523 = vmatmul.mubr.bf16.gmra.mxu0 %v442
        %v524 = vpop.f32.mrf.mxu0
        %v525 = vadd.f32 0.0, %v524
        %v526 = vpop.f32.mrf.mxu0
        %v527 = vpop.f32.mrf.mxu0
        %v528 = vadd.f32 0.0, %v527
        %v529 = vpop.f32.mrf.mxu0
        %530 = vmatprep.mubr.bf16.mxu0 0
        %531 = vmatmul.mubr.bf16.gmra.mxu0 %v445
        %v532 = vpop.f32.mrf.mxu0
        %v533 = vadd.f32 0.0, %v532
        %v534 = vpop.f32.mrf.mxu0
        %v535 = vpop.f32.mrf.mxu0
        %v536 = vadd.f32 0.0, %v535
        %v537 = vpop.f32.mrf.mxu0
        %538 = vmatprep.mubr.bf16.mxu0 0
        %539 = vmatmul.mubr.bf16.gmra.mxu0 %v448
        %v540 = vpop.f32.mrf.mxu0
        %v541 = vadd.f32 0.0, %v540
        %v542 = vpop.f32.mrf.mxu0
        %v543 = vpop.f32.mrf.mxu0
        %v544 = vadd.f32 0.0, %v543
        %v545 = vpop.f32.mrf.mxu0
        %546 = vdwg.mxu0
        %v563 = vunpack.c.l.b16 %v297
        %v564 = vunpack.c.h.b16 %v297
        %v565 = vunpack.c.l.b16 %v298
        %v566 = vunpack.c.h.b16 %v298
        %v567 = vunpack.c.l.b16 %v299
        %v568 = vunpack.c.h.b16 %v299
        %v569 = vunpack.c.l.b16 %v300
        %v570 = vunpack.c.h.b16 %v300
        %v571 = vunpack.c.l.b16 %v301
        %v572 = vunpack.c.h.b16 %v301
        %v573 = vunpack.c.l.b16 %v302
        %v574 = vunpack.c.h.b16 %v302
        %v575 = vunpack.c.l.b16 %v303
        %v576 = vunpack.c.h.b16 %v303
        %v577 = vunpack.c.l.b16 %v304
        %v578 = vunpack.c.h.b16 %v304
        %v579 = vunpack.c.l.b16 %v305
        %v580 = vunpack.c.h.b16 %v305
        %v581 = vunpack.c.l.b16 %v306
        %v582 = vunpack.c.h.b16 %v306
        %v583 = vunpack.c.l.b16 %v307
        %v584 = vunpack.c.h.b16 %v307
        %v585 = vunpack.c.l.b16 %v308
        %v586 = vunpack.c.h.b16 %v308
        %v587 = vunpack.c.l.b16 %v309
        %v588 = vunpack.c.h.b16 %v309
        %v589 = vunpack.c.l.b16 %v310
        %v590 = vunpack.c.h.b16 %v310
        %v591 = vunpack.c.l.b16 %v311
        %v592 = vunpack.c.h.b16 %v311
        %v593 = vunpack.c.l.b16 %v312
        %v594 = vunpack.c.h.b16 %v312
        %v595 = vpack.c.b16 %v565, %v563
        %v596 = vpack.c.b16 %v566, %v564
        %v597 = vpack.c.b16 %v569, %v567
        %v598 = vpack.c.b16 %v570, %v568
        %v599 = vpack.c.b16 %v573, %v571
        %v600 = vpack.c.b16 %v574, %v572
        %v601 = vpack.c.b16 %v577, %v575
        %v602 = vpack.c.b16 %v578, %v576
        %v603 = vpack.c.b16 %v581, %v579
        %v604 = vpack.c.b16 %v582, %v580
        %v605 = vpack.c.b16 %v585, %v583
        %v606 = vpack.c.b16 %v586, %v584
        %v607 = vpack.c.b16 %v589, %v587
        %v608 = vpack.c.b16 %v590, %v588
        %v609 = vpack.c.b16 %v593, %v591
        %v610 = vpack.c.b16 %v594, %v592
        %v643 = vunpack.c.l.b16 %v313
        %v644 = vunpack.c.l.b16 %v314
        %v645 = vunpack.c.l.b16 %v315
        %v646 = vunpack.c.l.b16 %v316
        %v647 = vunpack.c.l.b16 %v317
        %v648 = vunpack.c.l.b16 %v318
        %v649 = vunpack.c.l.b16 %v319
        %v650 = vunpack.c.l.b16 %v320
        %v651 = vunpack.c.l.b16 %v321
        %v652 = vunpack.c.l.b16 %v322
        %v653 = vunpack.c.l.b16 %v323
        %v654 = vunpack.c.l.b16 %v324
        %v655 = vunpack.c.l.b16 %v325
        %v656 = vunpack.c.l.b16 %v326
        %v657 = vunpack.c.l.b16 %v327
        %v658 = vunpack.c.l.b16 %v328
        %v659 = vunpack.c.l.b16 %v329
        %v660 = vunpack.c.l.b16 %v330
        %v661 = vunpack.c.l.b16 %v331
        %v662 = vunpack.c.l.b16 %v332
        %v663 = vunpack.c.l.b16 %v333
        %v664 = vunpack.c.l.b16 %v334
        %v665 = vunpack.c.l.b16 %v335
        %v666 = vunpack.c.l.b16 %v336
        %v667 = vpack.c.b16 %v644, %v643
        %v668 = vpack.c.b16 %v646, %v645
        %v669 = vpack.c.b16 %v648, %v647
        %v670 = vpack.c.b16 %v650, %v649
        %v671 = vpack.c.b16 %v652, %v651
        %v672 = vpack.c.b16 %v654, %v653
        %v673 = vpack.c.b16 %v656, %v655
        %v674 = vpack.c.b16 %v658, %v657
        %v675 = vpack.c.b16 %v660, %v659
        %v676 = vpack.c.b16 %v662, %v661
        %v677 = vpack.c.b16 %v664, %v663
        %v678 = vpack.c.b16 %v666, %v665
        %v692 = vsel %vm425, %v596, 0
        %v695 = vsel %vm425, %v598, 0
        %v698 = vsel %vm425, %v600, 0
        %v701 = vsel %vm425, %v602, 0
        %v704 = vsel %vm425, %v604, 0
        %v707 = vsel %vm425, %v606, 0
        %v710 = vsel %vm425, %v608, 0
        %v713 = vsel %vm425, %v610, 0
        %715 = vmatprep.subr.bf16.mxu0 0
        %716 = vmatpush1.bf16.msra.mxu0 %v674
        %717 = vmatprep.subr.bf16.mxu0 0
        %718 = vmatpush1.bf16.msra.mxu0 %v673
        %719 = vmatprep.subr.bf16.mxu0 0
        %720 = vmatpush1.bf16.msra.mxu0 %v672
        %721 = vmatprep.subr.bf16.mxu0 0
        %722 = vmatpush1.bf16.msra.mxu0 %v671
        %723 = vmatprep.subr.bf16.mxu0 0
        %724 = vmatpush1.bf16.msra.mxu0 %v670
        %725 = vmatprep.subr.bf16.mxu0 0
        %726 = vmatpush1.bf16.msra.mxu0 %v669
        %727 = vmatprep.subr.bf16.mxu0 0
        %728 = vmatpush1.bf16.msra.mxu0 %v668
        %729 = vmatprep.subr.bf16.mxu0 0
        %730 = vmatpush1.bf16.msra.mxu0 %v667
        %731 = vmatprep.subr.bf16.mxu0 0
        %732 = vmatpush2.bf16.msra.mxu0 0
        %733 = vmatprep.subr.bf16.mxu0 0
        %734 = vmatpush2.bf16.msra.mxu0 0
        %735 = vmatprep.subr.bf16.mxu0 0
        %736 = vmatpush2.bf16.msra.mxu0 0
        %737 = vmatprep.subr.bf16.mxu0 0
        %738 = vmatpush2.bf16.msra.mxu0 0
        %739 = vmatprep.subr.bf16.mxu0 0
        %740 = vmatpush2.bf16.msra.mxu0 %v678
        %741 = vmatprep.subr.bf16.mxu0 0
        %742 = vmatpush2.bf16.msra.mxu0 %v677
        %743 = vmatprep.subr.bf16.mxu0 0
        %744 = vmatpush2.bf16.msra.mxu0 %v676
        %745 = vmatprep.subr.bf16.mxu0 0
        %746 = vmatpush2.bf16.msra.mxu0 %v675
        %747 = vmatprep.mubr.bf16.mxu0 %v692
        %748 = vmatmul.mubr.bf16.gmra.mxu0 %v595
        %v749 = vpop.f32.mrf.mxu0
        %v750 = vadd.f32 %v485, %v749
        %v751 = vpop.f32.mrf.mxu0
        %v752 = vpop.f32.mrf.mxu0
        %v753 = vadd.f32 %v488, %v752
        %v754 = vpop.f32.mrf.mxu0
        %755 = vmatprep.mubr.bf16.mxu0 %v695
        %756 = vmatmul.mubr.bf16.gmra.mxu0 %v597
        %v757 = vpop.f32.mrf.mxu0
        %v758 = vadd.f32 %v493, %v757
        %v759 = vpop.f32.mrf.mxu0
        %v760 = vpop.f32.mrf.mxu0
        %v761 = vadd.f32 %v496, %v760
        %v762 = vpop.f32.mrf.mxu0
        %763 = vmatprep.mubr.bf16.mxu0 %v698
        %764 = vmatmul.mubr.bf16.gmra.mxu0 %v599
        %v765 = vpop.f32.mrf.mxu0
        %v766 = vadd.f32 %v501, %v765
        %v767 = vpop.f32.mrf.mxu0
        %v768 = vpop.f32.mrf.mxu0
        %v769 = vadd.f32 %v504, %v768
        %v770 = vpop.f32.mrf.mxu0
        %771 = vmatprep.mubr.bf16.mxu0 %v701
        %772 = vmatmul.mubr.bf16.gmra.mxu0 %v601
        %v773 = vpop.f32.mrf.mxu0
        %v774 = vadd.f32 %v509, %v773
        %v775 = vpop.f32.mrf.mxu0
        %v776 = vpop.f32.mrf.mxu0
        %v777 = vadd.f32 %v512, %v776
        %v778 = vpop.f32.mrf.mxu0
        %779 = vmatprep.mubr.bf16.mxu0 %v704
        %780 = vmatmul.mubr.bf16.gmra.mxu0 %v603
        %v781 = vpop.f32.mrf.mxu0
        %v782 = vadd.f32 %v517, %v781
        %v783 = vpop.f32.mrf.mxu0
        %v784 = vpop.f32.mrf.mxu0
        %v785 = vadd.f32 %v520, %v784
        %v786 = vpop.f32.mrf.mxu0
        %787 = vmatprep.mubr.bf16.mxu0 %v707
        %788 = vmatmul.mubr.bf16.gmra.mxu0 %v605
        %v789 = vpop.f32.mrf.mxu0
        %v790 = vadd.f32 %v525, %v789
        %v791 = vpop.f32.mrf.mxu0
        %v792 = vpop.f32.mrf.mxu0
        %v793 = vadd.f32 %v528, %v792
        %v794 = vpop.f32.mrf.mxu0
        %795 = vmatprep.mubr.bf16.mxu0 %v710
        %796 = vmatmul.mubr.bf16.gmra.mxu0 %v607
        %v797 = vpop.f32.mrf.mxu0
        %v798 = vadd.f32 %v533, %v797
        %v799 = vpop.f32.mrf.mxu0
        %v800 = vpop.f32.mrf.mxu0
        %v801 = vadd.f32 %v536, %v800
        %v802 = vpop.f32.mrf.mxu0
        %803 = vmatprep.mubr.bf16.mxu0 %v713
        %804 = vmatmul.mubr.bf16.gmra.mxu0 %v609
        %v805 = vpop.f32.mrf.mxu0
        %v806 = vadd.f32 %v541, %v805
        %v807 = vpop.f32.mrf.mxu0
        %v808 = vpop.f32.mrf.mxu0
        %v809 = vadd.f32 %v544, %v808
        %v810 = vpop.f32.mrf.mxu0
        %811 = vdwg.mxu0
        %v812 = vld [vmem:[%s4] sm:$0x1]
        %v814 = vlaneseq
        %v815 = vshrl.u32 %v814, 7
        %v816 = vsub.s32 0, %v815
        %v817 = vrot.slane %v812, %v816
        %v819 = vadd.f32 %v750, %v817
        %v820 = vadd.f32 %v753, %v817
        %v821 = vadd.f32 %v758, %v817
        %v822 = vadd.f32 %v761, %v817
        %v823 = vadd.f32 %v766, %v817
        %v824 = vadd.f32 %v769, %v817
        %v825 = vadd.f32 %v774, %v817
        %v826 = vadd.f32 %v777, %v817
        %v827 = vadd.f32 %v782, %v817
        %v828 = vadd.f32 %v785, %v817
        %v829 = vadd.f32 %v790, %v817
        %v830 = vadd.f32 %v793, %v817
        %v831 = vadd.f32 %v798, %v817
        %v832 = vadd.f32 %v801, %v817
        %v833 = vadd.f32 %v806, %v817
        %v834 = vadd.f32 %v809, %v817
        %v835 = vpack.c.bf16 %v820, %v819
        %v836 = vpack.c.bf16 %v822, %v821
        %v837 = vpack.c.bf16 %v824, %v823
        %v838 = vpack.c.bf16 %v826, %v825
        %v839 = vpack.c.bf16 %v828, %v827
        %v840 = vpack.c.bf16 %v830, %v829
        %v841 = vpack.c.bf16 %v832, %v831
        %v842 = vpack.c.bf16 %v834, %v833
        %v851 = vunpack.c.l.b16 %v835
        %v852 = vunpack.c.h.b16 %v835
        %v853 = vunpack.c.l.b16 %v836
        %v854 = vunpack.c.h.b16 %v836
        %v855 = vunpack.c.l.b16 %v837
        %v856 = vunpack.c.h.b16 %v837
        %v857 = vunpack.c.l.b16 %v838
        %v858 = vunpack.c.h.b16 %v838
        %v859 = vunpack.c.l.b16 %v839
        %v860 = vunpack.c.h.b16 %v839
        %v861 = vunpack.c.l.b16 %v840
        %v862 = vunpack.c.h.b16 %v840
        %v863 = vunpack.c.l.b16 %v841
        %v864 = vunpack.c.h.b16 %v841
        %v865 = vunpack.c.l.b16 %v842
        %v866 = vunpack.c.h.b16 %v842
        %v867 = vpack.c.b16 %v851, %v851
        %v868 = vpack.c.b16 %v852, %v852
        %v869 = vpack.c.b16 %v853, %v853
        %v870 = vpack.c.b16 %v854, %v854
        %v871 = vpack.c.b16 %v855, %v855
        %v872 = vpack.c.b16 %v856, %v856
        %v873 = vpack.c.b16 %v857, %v857
        %v874 = vpack.c.b16 %v858, %v858
        %v875 = vpack.c.b16 %v859, %v859
        %v876 = vpack.c.b16 %v860, %v860
        %v877 = vpack.c.b16 %v861, %v861
        %v878 = vpack.c.b16 %v862, %v862
        %v879 = vpack.c.b16 %v863, %v863
        %v880 = vpack.c.b16 %v864, %v864
        %v881 = vpack.c.b16 %v865, %v865
        %v882 = vpack.c.b16 %v866, %v866
        %vm899 = vcmask 60416
        %900 = vst.msk [vmem:[%s259] sm:$0xf] %vm899, %v867
        %901 = vst.msk [vmem:[%s259 + $0x4] sm:$0xf] %vm899, %v868
        %902 = vst.msk [vmem:[%s259 + $0x8] sm:$0xf] %vm899, %v869
        %903 = vst.msk [vmem:[%s259 + $0xc] sm:$0xf] %vm899, %v870
        %904 = vst.msk [vmem:[%s259 + $0x10] sm:$0xf] %vm899, %v871
        %905 = vst.msk [vmem:[%s259 + $0x14] sm:$0xf] %vm899, %v872
        %906 = vst.msk [vmem:[%s259 + $0x18] sm:$0xf] %vm899, %v873
        %907 = vst.msk [vmem:[%s259 + $0x1c] sm:$0xf] %vm899, %v874
        %908 = vst.msk [vmem:[%s259 + $0x20] sm:$0xf] %vm899, %v875
        %909 = vst.msk [vmem:[%s259 + $0x24] sm:$0xf] %vm899, %v876
        %910 = vst.msk [vmem:[%s259 + $0x28] sm:$0xf] %vm899, %v877
        %911 = vst.msk [vmem:[%s259 + $0x2c] sm:$0xf] %vm899, %v878
        %912 = vst.msk [vmem:[%s259 + $0x30] sm:$0xf] %vm899, %v879
        %913 = vst.msk [vmem:[%s259 + $0x34] sm:$0xf] %vm899, %v880
        %914 = vst.msk [vmem:[%s259 + $0x38] sm:$0xf] %vm899, %v881
        %915 = vst.msk [vmem:[%s259 + $0x3c] sm:$0xf] %vm899, %v882
        %s916 = sand.u32 %s139, 1
        %s917 = sand.u32 %s139, 1
        %s918 = smul.addr %s917, 64
        %s919 = scalar_lea.vmem [#allocation2], %s918
        // Predicated region
        $region41: #{encoder_forward.1} parent=39 // pred_check
          %p920 = pneg %p149
        $region42: #{encoder_forward.1} parent=39 // pred_check_branch
          %922 = sbr.rel (%p920) target = $region44
        $region43: #{encoder_forward.1} parent=39 // pred_region
          %s923 = smul.u32 16, %s16
          %s924 = ssub.s32 38, %s923
          %p925 = scmp.lt.s32.totalorder %s924, 16
          %s926 = scalar_select %p925, %s924, 16
          %s927 = smul.u32 64, %s926
          %p928 = scmp.ne.s32.totalorder 0, %s927
          %s929 = smul.addr %s923, 4
          %s930 = scalar_lea.vmem %s5, %s929
          // Predicated region
          $region45: #{encoder_forward.1} parent=43 // pred_check
            %p931 = pneg %p928
          $region46: #{encoder_forward.1} parent=43 // pred_check_branch
            %933 = sbr.rel (%p931) target = $region48
          $region47: #{encoder_forward.1} parent=43 // pred_region
            // Predicated region
            $region49: #{encoder_forward.1} parent=47 // pred_check
              _
            $region50: #{encoder_forward.1} parent=47 // pred_check_branch
              %935 = sbr.rel target = $region52
            $region51: #{encoder_forward.1} parent=47 // pred_region
              // Predicated region
              $region71: #{encoder_forward.1} parent=51 // pred_check
                _
              $region72: #{encoder_forward.1} parent=51 // pred_check_branch
                %1015 = sbr.rel (0) target = $region74
              $region73: #{encoder_forward.1} parent=51 // pred_region
                %s1017 = ssub.s32 16, 1
                %s1018 = sshrl.u32 %s926, 4
                // While loop
                $region75: #{encoder_forward.1} parent=73 // loop_pre_header
                  _
                $region76: #{encoder_forward.1} parent=73 // loop_header
                  %s1020 = sphi 0, %s1022
                  %p1021 = scmp.ge.s32.totalorder %s1020, %s1018
                  %s1025 = sphi 0, %s1062
                  %s1026 = sphi %s919, %s1065
                  %s1027 = sphi %s930, %s1066
                $region77: #{encoder_forward.1} parent=73 // loop_header_branch
                  %1024 = sbr.rel (%p1021) target = $region81
                $region78: #{encoder_forward.1} parent=73 // loop_body
                  %v1028 = vld [vmem:[%s1026] sm:%s1017]
                  %1029 = vst [vmem:[%s1027] sm:%s1017] %v1028
                  %v1030 = vld [vmem:[%s1026 + $0x4] sm:%s1017]
                  %1031 = vst [vmem:[%s1027 + $0x4] sm:%s1017] %v1030
                  %v1032 = vld [vmem:[%s1026 + $0x8] sm:%s1017]
                  %1033 = vst [vmem:[%s1027 + $0x8] sm:%s1017] %v1032
                  %v1034 = vld [vmem:[%s1026 + $0xc] sm:%s1017]
                  %1035 = vst [vmem:[%s1027 + $0xc] sm:%s1017] %v1034
                  %v1036 = vld [vmem:[%s1026 + $0x10] sm:%s1017]
                  %1037 = vst [vmem:[%s1027 + $0x10] sm:%s1017] %v1036
                  %v1038 = vld [vmem:[%s1026 + $0x14] sm:%s1017]
                  %1039 = vst [vmem:[%s1027 + $0x14] sm:%s1017] %v1038
                  %v1040 = vld [vmem:[%s1026 + $0x18] sm:%s1017]
                  %1041 = vst [vmem:[%s1027 + $0x18] sm:%s1017] %v1040
                  %v1042 = vld [vmem:[%s1026 + $0x1c] sm:%s1017]
                  %1043 = vst [vmem:[%s1027 + $0x1c] sm:%s1017] %v1042
                  %v1044 = vld [vmem:[%s1026 + $0x20] sm:%s1017]
                  %1045 = vst [vmem:[%s1027 + $0x20] sm:%s1017] %v1044
                  %v1046 = vld [vmem:[%s1026 + $0x24] sm:%s1017]
                  %1047 = vst [vmem:[%s1027 + $0x24] sm:%s1017] %v1046
                  %v1048 = vld [vmem:[%s1026 + $0x28] sm:%s1017]
                  %1049 = vst [vmem:[%s1027 + $0x28] sm:%s1017] %v1048
                  %v1050 = vld [vmem:[%s1026 + $0x2c] sm:%s1017]
                  %1051 = vst [vmem:[%s1027 + $0x2c] sm:%s1017] %v1050
                  %v1052 = vld [vmem:[%s1026 + $0x30] sm:%s1017]
                  %1053 = vst [vmem:[%s1027 + $0x30] sm:%s1017] %v1052
                  %v1054 = vld [vmem:[%s1026 + $0x34] sm:%s1017]
                  %1055 = vst [vmem:[%s1027 + $0x34] sm:%s1017] %v1054
                  %v1056 = vld [vmem:[%s1026 + $0x38] sm:%s1017]
                  %1057 = vst [vmem:[%s1027 + $0x38] sm:%s1017] %v1056
                  %v1058 = vld [vmem:[%s1026 + $0x3c] sm:%s1017]
                  %1059 = vst [vmem:[%s1027 + $0x3c] sm:%s1017] %v1058
                  %s1060 = sadd.s32 1, %s1025
                  %p1061 = scmp.ge.s32.totalorder %s1060, %s1018
                  %s1062 = scalar_select %p1061, 0, %s1060
                  %s1063 = smul.u32 %s1062, 64
                  %s1064 = smul.u32 %s1062, 64
                  %s1065 = scalar_lea.vmem %s919, %s1063 [#allocation2]
                  %s1066 = scalar_lea.vmem %s930, %s1064
                $region79: #{encoder_forward.1} parent=73 // loop_footer
                  %s1022 = sadd.s32 %s1020, 1
                $region80: #{encoder_forward.1} parent=73 // loop_footer_branch
                  %1019 = sbr.rel target = $region76
                $region81: #{encoder_forward.1} parent=73 // loop_exit
                  _
                %s1067 = sshrl.u32 %s926, 4
                %s1068 = sand.u32 %s926, 15
                %s1069 = smul.u32 %s1067, 16
                %s1070 = smul.u32 4, %s1069
                %s1071 = scalar_lea.vmem %s919, %s1070 [#allocation2]
                %s1072 = smul.u32 4, %s1069
                %s1073 = scalar_lea.vmem %s930, %s1072
                // While loop
                $region82: #{encoder_forward.1} parent=73 // loop_pre_header
                  _
                $region83: #{encoder_forward.1} parent=73 // loop_header
                  %s1075 = sphi 0, %s1077
                  %p1076 = scmp.ge.s32.totalorder %s1075, %s1068
                  %s1080 = sphi 0, %s1087
                  %s1081 = sphi %s1071, %s1090
                  %s1082 = sphi %s1073, %s1091
                $region84: #{encoder_forward.1} parent=73 // loop_header_branch
                  %1079 = sbr.rel (%p1076) target = $region88
                $region85: #{encoder_forward.1} parent=73 // loop_body
                  %v1083 = vld [vmem:[%s1081] sm:%s1017]
                  %1084 = vst [vmem:[%s1082] sm:%s1017] %v1083
                  %s1085 = sadd.s32 1, %s1080
                  %p1086 = scmp.ge.s32.totalorder %s1085, %s1068
                  %s1087 = scalar_select %p1086, 0, %s1085
                  %s1088 = smul.u32 %s1087, 4
                  %s1089 = smul.u32 %s1087, 4
                  %s1090 = scalar_lea.vmem %s1071, %s1088 [#allocation2]
                  %s1091 = scalar_lea.vmem %s1073, %s1089
                $region86: #{encoder_forward.1} parent=73 // loop_footer
                  %s1077 = sadd.s32 %s1075, 1
                $region87: #{encoder_forward.1} parent=73 // loop_footer_branch
                  %1074 = sbr.rel target = $region83
                $region88: #{encoder_forward.1} parent=73 // loop_exit
                  _
              $region74: #{encoder_forward.1} parent=51 // pred_fallthru
                _
            $region52: #{encoder_forward.1} parent=47 // pred_fallthru
              _
            // Predicated region
            $region53: #{encoder_forward.1} parent=47 // pred_check
              _
            $region54: #{encoder_forward.1} parent=47 // pred_check_branch
              %937 = sbr.rel (0) target = $region56
            $region55: #{encoder_forward.1} parent=47 // pred_region
              %s939 = ssub.s32 16, 1
              %s940 = sshrl.u32 %s926, 4
              // While loop
              $region57: #{encoder_forward.1} parent=55 // loop_pre_header
                _
              $region58: #{encoder_forward.1} parent=55 // loop_header
                %s942 = sphi 0, %s944
                %p943 = scmp.ge.s32.totalorder %s942, %s940
                %s947 = sphi 0, %s984
                %s948 = sphi %s919, %s987
                %s949 = sphi %s930, %s988
              $region59: #{encoder_forward.1} parent=55 // loop_header_branch
                %946 = sbr.rel (%p943) target = $region63
              $region60: #{encoder_forward.1} parent=55 // loop_body
                %v950 = vld [vmem:[%s948] sm:%s939]
                %951 = vst [vmem:[%s949] sm:%s939] %v950
                %v952 = vld [vmem:[%s948 + $0x4] sm:%s939]
                %953 = vst [vmem:[%s949 + $0x4] sm:%s939] %v952
                %v954 = vld [vmem:[%s948 + $0x8] sm:%s939]
                %955 = vst [vmem:[%s949 + $0x8] sm:%s939] %v954
                %v956 = vld [vmem:[%s948 + $0xc] sm:%s939]
                %957 = vst [vmem:[%s949 + $0xc] sm:%s939] %v956
                %v958 = vld [vmem:[%s948 + $0x10] sm:%s939]
                %959 = vst [vmem:[%s949 + $0x10] sm:%s939] %v958
                %v960 = vld [vmem:[%s948 + $0x14] sm:%s939]
                %961 = vst [vmem:[%s949 + $0x14] sm:%s939] %v960
                %v962 = vld [vmem:[%s948 + $0x18] sm:%s939]
                %963 = vst [vmem:[%s949 + $0x18] sm:%s939] %v962
                %v964 = vld [vmem:[%s948 + $0x1c] sm:%s939]
                %965 = vst [vmem:[%s949 + $0x1c] sm:%s939] %v964
                %v966 = vld [vmem:[%s948 + $0x20] sm:%s939]
                %967 = vst [vmem:[%s949 + $0x20] sm:%s939] %v966
                %v968 = vld [vmem:[%s948 + $0x24] sm:%s939]
                %969 = vst [vmem:[%s949 + $0x24] sm:%s939] %v968
                %v970 = vld [vmem:[%s948 + $0x28] sm:%s939]
                %971 = vst [vmem:[%s949 + $0x28] sm:%s939] %v970
                %v972 = vld [vmem:[%s948 + $0x2c] sm:%s939]
                %973 = vst [vmem:[%s949 + $0x2c] sm:%s939] %v972
                %v974 = vld [vmem:[%s948 + $0x30] sm:%s939]
                %975 = vst [vmem:[%s949 + $0x30] sm:%s939] %v974
                %v976 = vld [vmem:[%s948 + $0x34] sm:%s939]
                %977 = vst [vmem:[%s949 + $0x34] sm:%s939] %v976
                %v978 = vld [vmem:[%s948 + $0x38] sm:%s939]
                %979 = vst [vmem:[%s949 + $0x38] sm:%s939] %v978
                %v980 = vld [vmem:[%s948 + $0x3c] sm:%s939]
                %981 = vst [vmem:[%s949 + $0x3c] sm:%s939] %v980
                %s982 = sadd.s32 1, %s947
                %p983 = scmp.ge.s32.totalorder %s982, %s940
                %s984 = scalar_select %p983, 0, %s982
                %s985 = smul.u32 %s984, 64
                %s986 = smul.u32 %s984, 64
                %s987 = scalar_lea.vmem %s919, %s985 [#allocation2]
                %s988 = scalar_lea.vmem %s930, %s986
              $region61: #{encoder_forward.1} parent=55 // loop_footer
                %s944 = sadd.s32 %s942, 1
              $region62: #{encoder_forward.1} parent=55 // loop_footer_branch
                %941 = sbr.rel target = $region58
              $region63: #{encoder_forward.1} parent=55 // loop_exit
                _
              %s989 = sshrl.u32 %s926, 4
              %s990 = sand.u32 %s926, 15
              %s991 = smul.u32 %s989, 16
              %s992 = smul.u32 4, %s991
              %s993 = scalar_lea.vmem %s919, %s992 [#allocation2]
              %s994 = smul.u32 4, %s991
              %s995 = scalar_lea.vmem %s930, %s994
              // While loop
              $region64: #{encoder_forward.1} parent=55 // loop_pre_header
                _
              $region65: #{encoder_forward.1} parent=55 // loop_header
                %s997 = sphi 0, %s999
                %p998 = scmp.ge.s32.totalorder %s997, %s990
                %s1002 = sphi 0, %s1009
                %s1003 = sphi %s993, %s1012
                %s1004 = sphi %s995, %s1013
              $region66: #{encoder_forward.1} parent=55 // loop_header_branch
                %1001 = sbr.rel (%p998) target = $region70
              $region67: #{encoder_forward.1} parent=55 // loop_body
                %v1005 = vld [vmem:[%s1003] sm:%s939]
                %1006 = vst [vmem:[%s1004] sm:%s939] %v1005
                %s1007 = sadd.s32 1, %s1002
                %p1008 = scmp.ge.s32.totalorder %s1007, %s990
                %s1009 = scalar_select %p1008, 0, %s1007
                %s1010 = smul.u32 %s1009, 4
                %s1011 = smul.u32 %s1009, 4
                %s1012 = scalar_lea.vmem %s993, %s1010 [#allocation2]
                %s1013 = scalar_lea.vmem %s995, %s1011
              $region68: #{encoder_forward.1} parent=55 // loop_footer
                %s999 = sadd.s32 %s997, 1
              $region69: #{encoder_forward.1} parent=55 // loop_footer_branch
                %996 = sbr.rel target = $region65
              $region70: #{encoder_forward.1} parent=55 // loop_exit
                _
            $region56: #{encoder_forward.1} parent=47 // pred_fallthru
              _
          $region48: #{encoder_forward.1} parent=43 // pred_fallthru
            _
          %1092 = vnop
        $region44: #{encoder_forward.1} parent=39 // pred_fallthru
          _
      $region40: #{encoder_forward.1} parent=5 // pred_fallthru
        _
      %p1093 = scmp.le.s32.totalorder 2, %s11
      // Predicated region
      $region89: #{encoder_forward.1} parent=5 // pred_check
        %p1094 = pneg %p1093
      $region90: #{encoder_forward.1} parent=5 // pred_check_branch
        %1096 = sbr.rel (%p1094) target = $region92
      $region91: #{encoder_forward.1} parent=5 // pred_region
        %s1097 = ssub.s32 %s11, 2
        // Predicated region
        $region93: #{encoder_forward.1} parent=91 // pred_check
          %p1098 = pneg %p155
        $region94: #{encoder_forward.1} parent=91 // pred_check_branch
          %1100 = sbr.rel (%p1098) target = $region96
        $region95: #{encoder_forward.1} parent=91 // pred_region
          %s1101 = sand.u32 %s140, 1
          %s1102 = sand.u32 %s140, 1
          %s1103 = smul.addr %s1102, 64
          %s1104 = scalar_lea.vmem [#allocation2], %s1103
        $region96: #{encoder_forward.1} parent=91 // pred_fallthru
          _
      $region92: #{encoder_forward.1} parent=5 // pred_fallthru
        _
    $region6: #{encoder_forward.1} parent=1 // loop_footer
      %s15 = sadd.s32 1, %s11
    $region7: #{encoder_forward.1} parent=1 // loop_footer_branch
      %10 = sbr.rel target = $region3
    $region8: #{encoder_forward.1} parent=1 // loop_exit
      _

</llo_original>
